<compile_context>
chip_gen: v6e
topology: v6e:2x2x1
jax: 0.10.0
libtpu: 0.0.40
codegen_flags: <defaults>
</compile_context>

<pallas_src>
import functools

import jax
import jax.numpy as jnp
from jax import lax
from jax.experimental import pallas as pl
from jax.experimental.pallas import tpu as pltpu

HIDDEN = (256, 128, 64)
BN_EPS = 1e-5


def _device_kind():
    try:
        return jax.devices()[0].device_kind.lower()
    except Exception:
        return ""


_KIND = _device_kind()
_IS_V7 = "v7" in _KIND
# v6e / v7x VPUs are bf16-native -> bf16 elementwise epilogue; v5e/v4 keep f32.
_BF16_EPILOGUE = ("v6" in _KIND) or ("v7" in _KIND)
ACT_DTYPE = jnp.bfloat16 if _BF16_EPILOGUE else jnp.float32


def _cdiv(a, b):
    return -(-a // b)


def _round_up(x, m):
    return ((x + m - 1) // m) * m


def mlp_kernel(x_ref,
               w1_ref, b1_ref,
               w2_ref, b2_ref,
               w3_ref, b3_ref,
               w4_ref, b4_ref,
               o_ref, *, act_dtype):
    # BN scale/shift + linear bias are pre-folded into (wN, bN); Dropout = identity.
    x = x_ref[...]                                    # (tm, F) f32

    # Layer 1 kept fully f32 (K=10 is cheap; preserves precision of BN-scaled w1).
    h = jnp.dot(x, w1_ref[...], preferred_element_type=jnp.float32) + b1_ref[...]
    h = jnp.maximum(h, 0.0).astype(act_dtype)         # (tm, 256)

    def layer(h, w_ref, b_ref):
        a = h.astype(jnp.bfloat16)                    # no-op when act_dtype is bf16
        z = jnp.dot(a, w_ref[...], preferred_element_type=act_dtype) + b_ref[...]
        return jnp.maximum(z, 0)

    h = layer(h, w2_ref, b2_ref)                      # (tm, 128)
    h = layer(h, w3_ref, b3_ref)                      # (tm, 64)

    # Final Linear(64, 1): contract the 64-feature axis of both operands so the
    # result comes out as a lane-dense (1, tm) row (no 128-lane padded writeback).
    out_row = lax.dot_general(
        w4_ref[...], h.astype(jnp.bfloat16),
        dimension_numbers=(((1,), (1,)), ((), ())),
        preferred_element_type=jnp.float32)           # (1, tm)
    o_ref[...] = (out_row + b4_ref[...]).astype(o_ref.dtype)


def make_raw_params(key, in_features):
    """Deterministic synthetic parameters in PyTorch layout (W: (out, in))."""
    dims = [in_features] + list(HIDDEN) + [1]
    keys = iter(jax.random.split(key, 32))
    raw = {}
    for li in range(1, 5):
        fan_in, fan_out = dims[li - 1], dims[li]
        bound = 1.0 / (fan_in ** 0.5)
        raw[f"w{li}"] = jax.random.uniform(next(keys), (fan_out, fan_in),
                                           jnp.float32, -bound, bound)
        raw[f"b{li}"] = jax.random.uniform(next(keys), (fan_out,),
                                           jnp.float32, -bound, bound)
        if li <= 3:  # BatchNorm1d after the first three Linears
            raw[f"g{li}"] = 1.0 + 0.1 * jax.random.normal(next(keys), (fan_out,), jnp.float32)
            raw[f"beta{li}"] = 0.1 * jax.random.normal(next(keys), (fan_out,), jnp.float32)
            raw[f"mean{li}"] = 0.1 * jax.random.normal(next(keys), (fan_out,), jnp.float32)
            raw[f"var{li}"] = 1.0 + 0.1 * jax.random.uniform(next(keys), (fan_out,), jnp.float32)
    return raw


def fold_params(raw, eps=BN_EPS):
    """Fold eval-mode BatchNorm + bias into each Linear.

    Hidden layers:  y = ((x @ W^T + b) - mean) * g/sqrt(var+eps) + beta
                      = x @ (W^T * scale) + (b * scale + shift)
    Layer 1 stays f32 (tiny K, protects against bf16 loss on BN-scaled weights);
    layers 2/3 weights are bf16 matmul operands, biases in the epilogue dtype.
    Layer 4 keeps the PyTorch (1, 64) row layout for the transposed final matmul.
    """
    params = []
    for li in (1, 2, 3):
        w = raw[f"w{li}"].T                                   # (in, out)
        b = raw[f"b{li}"]                                     # (out,)
        scale = raw[f"g{li}"] / jnp.sqrt(raw[f"var{li}"] + eps)
        shift = raw[f"beta{li}"] - raw[f"mean{li}"] * scale
        w = w * scale[None, :]
        b = (b * scale + shift)[None, :]                      # (1, out)
        if li == 1:
            params += [w.astype(jnp.float32), b.astype(jnp.float32)]
        else:
            params += [w.astype(jnp.bfloat16), b.astype(ACT_DTYPE)]
    params.append(raw["w4"].astype(jnp.bfloat16))             # (1, 64)
    params.append(raw["b4"].reshape(1, 1).astype(jnp.float32))
    return tuple(params)


@functools.partial(jax.jit, static_argnames=("block_m",))
def mlp_forward(x, params, *, block_m=1024):
    """Fused MLP forward. x: (B, in_features) f32 -> (B, 1) f32."""
    B, F = x.shape

    # Tile count: minimize padding; on v7x keep an even number (>=2) of tiles so
    # both TensorCores get work from the "parallel" batch axis.
    num_tiles = _cdiv(B, block_m)
    if _IS_V7 and B >= 16:
        num_tiles = max(num_tiles, 2)
        if num_tiles % 2:
            num_tiles += 1
    tm = _round_up(_cdiv(B, num_tiles), 8)
    b_pad = tm * num_tiles
    if b_pad != B:
        x = jnp.pad(x, ((0, b_pad - B), (0, 0)))

    # Weights/biases: full-array blocks, constant index_map -> VMEM-resident.
    weight_specs = [pl.BlockSpec(p.shape, lambda i: (0, 0)) for p in params]
    in_specs = [pl.BlockSpec((tm, F), lambda i: (i, 0))] + weight_specs
    out_specs = pl.BlockSpec((1, tm), lambda i: (i, 0))

    flops = 2 * b_pad * (F * HIDDEN[0] + HIDDEN[0] * HIDDEN[1]
                         + HIDDEN[1] * HIDDEN[2] + HIDDEN[2] * 1)
    bytes_accessed = (b_pad * F * 4
                      + sum(int(p.size) * p.dtype.itemsize for p in params)
                      + b_pad * 4)

    out = pl.pallas_call(
        functools.partial(mlp_kernel, act_dtype=ACT_DTYPE),
        out_shape=jax.ShapeDtypeStruct((num_tiles, tm), jnp.float32),
        grid=(num_tiles,),
        in_specs=in_specs,
        out_specs=out_specs,
        compiler_params=pltpu.CompilerParams(
            dimension_semantics=("parallel",),
        ),
        cost_estimate=pl.CostEstimate(flops=flops, transcendentals=0,
                                      bytes_accessed=bytes_accessed),
    )(x, *params)

    # (num_tiles, tm) rows are consecutive batch chunks -> flatten, drop padding.
    return out.reshape(-1)[:B].reshape(B, 1)


def mlp_reference(x, raw, eps=BN_EPS):
    """Pure-JAX f32 reference of the PyTorch module in eval mode."""
    h = x
    for li in (1, 2, 3):
        h = h @ raw[f"w{li}"].T + raw[f"b{li}"]
        scale = raw[f"g{li}"] / jnp.sqrt(raw[f"var{li}"] + eps)
        h = (h - raw[f"mean{li}"]) * scale + raw[f"beta{li}"]
        h = jnp.maximum(h, 0.0)
    return h @ raw["w4"].T + raw["b4"]


if __name__ == "__main__":
    key = jax.random.PRNGKey(0)
    kx, kp = jax.random.split(key)

    batch, in_features = 8, 10  # GMSC-style tabular input
    x = jax.random.normal(kx, (batch, in_features), jnp.float32)

    raw = make_raw_params(kp, in_features)
    params = fold_params(raw)

    out = jax.block_until_ready(mlp_forward(x, params))
    assert out.shape == (batch, 1), out.shape

    ref = mlp_reference(x, raw)
    max_err = float(jnp.max(jnp.abs(out - ref)))
    tol = 1e-1 * max(1.0, float(jnp.max(jnp.abs(ref))))
    assert max_err < tol, f"max abs err vs f32 reference: {max_err} (tol {tol})"

    # TODO(synk): Dropout(0.3) / BatchNorm batch-statistics are training-mode only;
    # this kernel implements eval-mode semantics (dropout identity, BN folded).
    print("KERNEL_OK")
</pallas_src>

<mosaic_0001>
module attributes {stable_mosaic.version = 11 : i64} {
  func.func @mlp_kernel(%arg0: i32, %arg1: memref<8x10xf32, #tpu.memory_space<vmem>>, %arg2: memref<10x256xf32, #tpu.memory_space<vmem>>, %arg3: memref<1x256xf32, #tpu.memory_space<vmem>>, %arg4: memref<256x128xbf16, #tpu.memory_space<vmem>>, %arg5: memref<1x128xf32, #tpu.memory_space<vmem>>, %arg6: memref<128x64xbf16, #tpu.memory_space<vmem>>, %arg7: memref<1x64xf32, #tpu.memory_space<vmem>>, %arg8: memref<1x64xbf16, #tpu.memory_space<vmem>>, %arg9: memref<1x1xf32, #tpu.memory_space<vmem>>, %arg10: memref<1x8xf32, #tpu.memory_space<vmem>>) attributes {dimension_semantics = [#tpu.dimension_semantics<parallel>], iteration_bounds = array<i64: 1>, scalar_prefetch = 0 : i64, scratch_operands = 0 : i64, tpu.core_type = #tpu.core_type<tc>, window_params = [{transform_indices = @transform_0, window_bounds = array<i64: 8, 10>}, {pipeline_mode = #tpu.pipeline_mode<synchronous>, transform_indices = @transform_1, window_bounds = array<i64: 10, 256>}, {pipeline_mode = #tpu.pipeline_mode<synchronous>, transform_indices = @transform_2, window_bounds = array<i64: 1, 256>}, {pipeline_mode = #tpu.pipeline_mode<synchronous>, transform_indices = @transform_3, window_bounds = array<i64: 256, 128>}, {pipeline_mode = #tpu.pipeline_mode<synchronous>, transform_indices = @transform_4, window_bounds = array<i64: 1, 128>}, {pipeline_mode = #tpu.pipeline_mode<synchronous>, transform_indices = @transform_5, window_bounds = array<i64: 128, 64>}, {pipeline_mode = #tpu.pipeline_mode<synchronous>, transform_indices = @transform_6, window_bounds = array<i64: 1, 64>}, {pipeline_mode = #tpu.pipeline_mode<synchronous>, transform_indices = @transform_7, window_bounds = array<i64: 1, 64>}, {pipeline_mode = #tpu.pipeline_mode<synchronous>, transform_indices = @transform_8, window_bounds = array<i64: 1, 1>}, {transform_indices = @transform_9, window_bounds = array<i64: 1, 8>}]} {
    %c0 = arith.constant 0 : index
    %c0_0 = arith.constant 0 : index
    %0 = vector.load %arg1[%c0, %c0_0] : memref<8x10xf32, #tpu.memory_space<vmem>>, vector<8x10xf32>
    %c0_1 = arith.constant 0 : index
    %c0_2 = arith.constant 0 : index
    %1 = vector.load %arg2[%c0_1, %c0_2] : memref<10x256xf32, #tpu.memory_space<vmem>>, vector<10x256xf32>
    %cst = arith.constant dense<0.000000e+00> : vector<8x256xf32>
    %2 = tpu.matmul %0, %1, %cst {dimension_numbers = #tpu.dot_dimension_numbers<[1], [0], [0], [1], [0, 0, 1, 1], [], []>} : vector<8x10xf32>, vector<10x256xf32>, vector<8x256xf32> -> vector<8x256xf32>
    %c0_3 = arith.constant 0 : index
    %c0_4 = arith.constant 0 : index
    %3 = vector.load %arg3[%c0_3, %c0_4] : memref<1x256xf32, #tpu.memory_space<vmem>>, vector<1x256xf32>
    %4 = vector.broadcast %3 : vector<1x256xf32> to vector<8x256xf32>
    %5 = arith.addf %2, %4 : vector<8x256xf32>
    %cst_5 = arith.constant 0.000000e+00 : f32
    %6 = vector.broadcast %cst_5 : f32 to vector<8x256xf32>
    %7 = arith.maximumf %5, %6 : vector<8x256xf32>
    %8 = arith.truncf %7 : vector<8x256xf32> to vector<8x256xbf16>
    %c0_6 = arith.constant 0 : index
    %c0_7 = arith.constant 0 : index
    %9 = vector.load %arg4[%c0_6, %c0_7] : memref<256x128xbf16, #tpu.memory_space<vmem>>, vector<256x128xbf16>
    %cst_8 = arith.constant dense<0.000000e+00> : vector<8x128xf32>
    %10 = tpu.matmul %8, %9, %cst_8 {dimension_numbers = #tpu.dot_dimension_numbers<[1], [0], [0], [1], [0, 0, 1, 1], [], []>} : vector<8x256xbf16>, vector<256x128xbf16>, vector<8x128xf32> -> vector<8x128xf32>
    %c0_9 = arith.constant 0 : index
    %c0_10 = arith.constant 0 : index
    %11 = vector.load %arg5[%c0_9, %c0_10] : memref<1x128xf32, #tpu.memory_space<vmem>>, vector<1x128xf32>
    %12 = vector.broadcast %11 : vector<1x128xf32> to vector<8x128xf32>
    %13 = arith.addf %10, %12 : vector<8x128xf32>
    %cst_11 = arith.constant 0.000000e+00 : f32
    %14 = vector.broadcast %cst_11 : f32 to vector<8x128xf32>
    %15 = arith.maximumf %13, %14 : vector<8x128xf32>
    %16 = arith.truncf %15 : vector<8x128xf32> to vector<8x128xbf16>
    %c0_12 = arith.constant 0 : index
    %c0_13 = arith.constant 0 : index
    %17 = vector.load %arg6[%c0_12, %c0_13] : memref<128x64xbf16, #tpu.memory_space<vmem>>, vector<128x64xbf16>
    %cst_14 = arith.constant dense<0.000000e+00> : vector<8x64xf32>
    %18 = tpu.matmul %16, %17, %cst_14 {dimension_numbers = #tpu.dot_dimension_numbers<[1], [0], [0], [1], [0, 0, 1, 1], [], []>} : vector<8x128xbf16>, vector<128x64xbf16>, vector<8x64xf32> -> vector<8x64xf32>
    %c0_15 = arith.constant 0 : index
    %c0_16 = arith.constant 0 : index
    %19 = vector.load %arg7[%c0_15, %c0_16] : memref<1x64xf32, #tpu.memory_space<vmem>>, vector<1x64xf32>
    %20 = vector.broadcast %19 : vector<1x64xf32> to vector<8x64xf32>
    %21 = arith.addf %18, %20 : vector<8x64xf32>
    %cst_17 = arith.constant 0.000000e+00 : f32
    %22 = vector.broadcast %cst_17 : f32 to vector<8x64xf32>
    %23 = arith.maximumf %21, %22 : vector<8x64xf32>
    %c0_18 = arith.constant 0 : index
    %c0_19 = arith.constant 0 : index
    %24 = vector.load %arg8[%c0_18, %c0_19] : memref<1x64xbf16, #tpu.memory_space<vmem>>, vector<1x64xbf16>
    %25 = arith.truncf %23 : vector<8x64xf32> to vector<8x64xbf16>
    %cst_20 = arith.constant dense<0.000000e+00> : vector<1x8xf32>
    %26 = tpu.matmul %24, %25, %cst_20 {dimension_numbers = #tpu.dot_dimension_numbers<[1], [1], [0], [0], [0, 0, 1, 0], [], []>} : vector<1x64xbf16>, vector<8x64xbf16>, vector<1x8xf32> -> vector<1x8xf32>
    %c0_21 = arith.constant 0 : index
    %c0_22 = arith.constant 0 : index
    %27 = vector.load %arg9[%c0_21, %c0_22] : memref<1x1xf32, #tpu.memory_space<vmem>>, vector<1x1xf32>
    %28 = vector.broadcast %27 : vector<1x1xf32> to vector<1x8xf32>
    %29 = arith.addf %26, %28 : vector<1x8xf32>
    %c0_23 = arith.constant 0 : index
    %c0_24 = arith.constant 0 : index
    %30 = vector.load %arg10[%c0_23, %c0_24] : memref<1x8xf32, #tpu.memory_space<vmem>>, vector<1x8xf32>
    tpu.vector_store %arg10[%c0_23, %c0_24], %29 {strides = array<i32>} : memref<1x8xf32, #tpu.memory_space<vmem>>, vector<1x8xf32>,
    return
  }
  func.func @transform_0(%arg0: i32) -> (i32, i32) {
    %c0_i32 = arith.constant 0 : i32
    %c0_i32_0 = arith.constant 0 : i32
    return %arg0, %c0_i32 : i32, i32
  }
  func.func @transform_1(%arg0: i32) -> (i32, i32) {
    %c0_i32 = arith.constant 0 : i32
    %c0_i32_0 = arith.constant 0 : i32
    %c0_i32_1 = arith.constant 0 : i32
    return %c0_i32, %c0_i32_0 : i32, i32
  }
  func.func @transform_2(%arg0: i32) -> (i32, i32) {
    %c0_i32 = arith.constant 0 : i32
    %c0_i32_0 = arith.constant 0 : i32
    %c0_i32_1 = arith.constant 0 : i32
    return %c0_i32, %c0_i32_0 : i32, i32
  }
  func.func @transform_3(%arg0: i32) -> (i32, i32) {
    %c0_i32 = arith.constant 0 : i32
    %c0_i32_0 = arith.constant 0 : i32
    %c0_i32_1 = arith.constant 0 : i32
    return %c0_i32, %c0_i32_0 : i32, i32
  }
  func.func @transform_4(%arg0: i32) -> (i32, i32) {
    %c0_i32 = arith.constant 0 : i32
    %c0_i32_0 = arith.constant 0 : i32
    %c0_i32_1 = arith.constant 0 : i32
    return %c0_i32, %c0_i32_0 : i32, i32
  }
  func.func @transform_5(%arg0: i32) -> (i32, i32) {
    %c0_i32 = arith.constant 0 : i32
    %c0_i32_0 = arith.constant 0 : i32
    %c0_i32_1 = arith.constant 0 : i32
    return %c0_i32, %c0_i32_0 : i32, i32
  }
  func.func @transform_6(%arg0: i32) -> (i32, i32) {
    %c0_i32 = arith.constant 0 : i32
    %c0_i32_0 = arith.constant 0 : i32
    %c0_i32_1 = arith.constant 0 : i32
    return %c0_i32, %c0_i32_0 : i32, i32
  }
  func.func @transform_7(%arg0: i32) -> (i32, i32) {
    %c0_i32 = arith.constant 0 : i32
    %c0_i32_0 = arith.constant 0 : i32
    %c0_i32_1 = arith.constant 0 : i32
    return %c0_i32, %c0_i32_0 : i32, i32
  }
  func.func @transform_8(%arg0: i32) -> (i32, i32) {
    %c0_i32 = arith.constant 0 : i32
    %c0_i32_0 = arith.constant 0 : i32
    %c0_i32_1 = arith.constant 0 : i32
    return %c0_i32, %c0_i32_0 : i32, i32
  }
  func.func @transform_9(%arg0: i32) -> (i32, i32) {
    %c0_i32 = arith.constant 0 : i32
    %c0_i32_0 = arith.constant 0 : i32
    return %arg0, %c0_i32 : i32, i32
  }
}

</mosaic_0001>

<llo_original>
// kernel: mlp_forward.1
$region0: #{mlp_forward.1}
  #allocation0 [shape = 'u32[]', space=smem, size = 0x4, offset = 0x4, fixed_abs, tag = 'smem constant byte address 0x4 - core index']
  #allocation1 [shape = 'u32[144,128]{1,0:T(1,128)}', space=vmem, size = 0x12000, scoped, tag = 'internal scratch']
  #allocation2 [shape = 'f32[1,1]{1,0:T(1,128)S(1)}', space=vmem, size = 0x200, scoped, tag = 'scoped memory for mlp_forward.1']
  %s0 = inlined_call_operand.vmem [shape: f32[8,10], index: 0, kind: input, shape index: {}]
  %s1 = inlined_call_operand.vmem [shape: f32[10,256], index: 1, kind: input, shape index: {}]
  %s2 = inlined_call_operand.vmem [shape: f32[1,256], index: 2, kind: input, shape index: {}]
  %s3 = inlined_call_operand.hbm [shape: bf16[256,128], index: 3, kind: input, shape index: {}]
  %s4 = inlined_call_operand.vmem [shape: f32[1,128], index: 4, kind: input, shape index: {}]
  %s5 = inlined_call_operand.vmem [shape: bf16[128,64], index: 5, kind: input, shape index: {}]
  %s6 = inlined_call_operand.vmem [shape: f32[1,64], index: 6, kind: input, shape index: {}]
  %s7 = inlined_call_operand.vmem [shape: bf16[1,64], index: 7, kind: input, shape index: {}]
  %s8 = inlined_call_operand.<no memory space> [shape: f32[1,1], index: 8, kind: input, shape index: {}]
  %s9 = inlined_call_operand.hbm [shape: f32[1,8], index: 9, kind: output, shape index: {}]
  %s10 = sld [smem:[#allocation0]]
  $region50: #{mlp_forward.1} parent=0
    _
  %s12 = ssub.s32 1, %s10
  %s13 = scalar_select 0, %s12, %s10
  %v14 = vstv %s8
  %15 = vst [vmem:[#allocation2] sm:$0x1] %v14
  $region1: #{mlp_forward.1} parent=0
    #allocation3 [shape = 'u8[65536]{0}', space=vmem, size = 0x10000, scoped, tag = 'input window, operand 3, single buffered']
    #allocation4 [shape = 's32[1]{0}', space=sflag, size = 0x4, scoped, tag = 'scoped memory for mlp_forward.1']
    #allocation5 [shape = 's32[1]{0}', space=sflag, size = 0x4, scoped, tag = 'scoped memory for mlp_forward.1']
    #allocation6 [shape = 'u8[512]{0}', space=vmem, size = 0x400, scoped, tag = 'output window, operand 0, single buffered']
    %16 = vsyncpa [#allocation4], 0
    %17 = vsyncpa [#allocation5], 0
    // Predicated region
    $region2: #{mlp_forward.1} parent=1 // pred_check
      _
    $region3: #{mlp_forward.1} parent=1 // pred_check_branch
      %19 = sbr.rel (0) target = $region5
    $region4: #{mlp_forward.1} parent=1 // pred_region
      _
    $region5: #{mlp_forward.1} parent=1 // pred_fallthru
      _
    // Predicated region
    $region6: #{mlp_forward.1} parent=1 // pred_check
      _
    $region7: #{mlp_forward.1} parent=1 // pred_check_branch
      %21 = sbr.rel (0) target = $region9
    $region8: #{mlp_forward.1} parent=1 // pred_region
      _
    $region9: #{mlp_forward.1} parent=1 // pred_fallthru
      _
    // Predicated region
    $region10: #{mlp_forward.1} parent=1 // pred_check
      _
    $region11: #{mlp_forward.1} parent=1 // pred_check_branch
      %23 = sbr.rel (0) target = $region13
    $region12: #{mlp_forward.1} parent=1 // pred_region
      _
    $region13: #{mlp_forward.1} parent=1 // pred_fallthru
      _
    // Predicated region
    $region14: #{mlp_forward.1} parent=1 // pred_check
      _
    $region15: #{mlp_forward.1} parent=1 // pred_check_branch
      %25 = sbr.rel (0) target = $region17
    $region16: #{mlp_forward.1} parent=1 // pred_region
      %s27 = ssub.s32 2048, 2048
      %28 = vsyncadd [#allocation4], %s27
      %s29 = sshll.u32 [#allocation3], 4
      %s30 = int_to_ptr.vmem [resolvable:$true] %s29
      %35 = dma.hbm_to_vmem [thread:$0]  %s3, 2048, %s30, [#allocation4], 64, 64, 4
    $region17: #{mlp_forward.1} parent=1 // pred_fallthru
      _
    // Predicated region
    $region18: #{mlp_forward.1} parent=1 // pred_check
      _
    $region19: #{mlp_forward.1} parent=1 // pred_check_branch
      %37 = sbr.rel (0) target = $region21
    $region20: #{mlp_forward.1} parent=1 // pred_region
      _
    $region21: #{mlp_forward.1} parent=1 // pred_fallthru
      _
    // Predicated region
    $region22: #{mlp_forward.1} parent=1 // pred_check
      _
    $region23: #{mlp_forward.1} parent=1 // pred_check_branch
      %39 = sbr.rel (0) target = $region25
    $region24: #{mlp_forward.1} parent=1 // pred_region
      _
    $region25: #{mlp_forward.1} parent=1 // pred_fallthru
      _
    // Predicated region
    $region26: #{mlp_forward.1} parent=1 // pred_check
      _
    $region27: #{mlp_forward.1} parent=1 // pred_check_branch
      %41 = sbr.rel (0) target = $region29
    $region28: #{mlp_forward.1} parent=1 // pred_region
      _
    $region29: #{mlp_forward.1} parent=1 // pred_fallthru
      _
    // Predicated region
    $region30: #{mlp_forward.1} parent=1 // pred_check
      _
    $region31: #{mlp_forward.1} parent=1 // pred_check_branch
      %43 = sbr.rel (0) target = $region33
    $region32: #{mlp_forward.1} parent=1 // pred_region
      _
    $region33: #{mlp_forward.1} parent=1 // pred_fallthru
      _
    // Predicated region
    $region34: #{mlp_forward.1} parent=1 // pred_check
      _
    $region35: #{mlp_forward.1} parent=1 // pred_check_branch
      %45 = sbr.rel (0) target = $region37
    $region36: #{mlp_forward.1} parent=1 // pred_region
      _
    $region37: #{mlp_forward.1} parent=1 // pred_fallthru
      _
    // Predicated region
    $region38: #{mlp_forward.1} parent=1 // pred_check
      _
    $region39: #{mlp_forward.1} parent=1 // pred_check_branch
      %47 = sbr.rel (0) target = $region41
    $region40: #{mlp_forward.1} parent=1 // pred_region
      %48 = dma.done [#allocation4], 2048
    $region41: #{mlp_forward.1} parent=1 // pred_fallthru
      _
    %v50 = vld [vmem:[%s0] sm:$0xff]
    %v51 = vld [vmem:[%s1] sm:$0xff]
    %v52 = vld [vmem:[%s1 + $0x8] sm:$0xff]
    %v53 = vld [vmem:[%s1 + $0x10] sm:$0x3]
    %v54 = vld [vmem:[%s1 + $0x18] sm:$0x3]
    %v55 = vld [vmem:[%s2] sm:$0x3]
    %v57 = vlaneseq
    %v58 = vshrl.u32 %v57, 7
    %v59 = vsub.s32 0, %v58
    %v60 = vrot.slane %v55, %v59
    %v61 = vlaneseq
    %v62 = vshrl.u32 %v61, 7
    %v63 = vsub.s32 1, %v62
    %v64 = vrot.slane %v55, %v63
    %vm67 = vcmask 80896
    %v69 = vsel %vm67, %v50, 0
    %vm71 = vcmask 1041408
    %v73 = vsel %vm71, %v53, 0
    %v76 = vsel %vm71, %v54, 0
    %78 = vmatprep.subr.mxu0 0.0
    %79 = vmatpush1.msra.mxu0 0.0
    %80 = vmatprep.subr.mxu0 0.0
    %81 = vmatpush1.msra.mxu0 0.0
    %82 = vmatprep.subr.mxu0 0.0
    %83 = vmatpush1.msra.mxu0 0.0
    %84 = vmatprep.subr.mxu0 0.0
    %85 = vmatpush1.msra.mxu0 0.0
    %86 = vmatprep.subr.mxu0 0.0
    %87 = vmatpush1.msra.mxu0 0.0
    %88 = vmatprep.subr.mxu0 0.0
    %89 = vmatpush1.msra.mxu0 0.0
    %90 = vmatprep.subr.mxu0 0.0
    %91 = vmatpush1.msra.mxu0 0.0
    %92 = vmatprep.subr.mxu0 0.0
    %93 = vmatpush1.msra.mxu0 0.0
    %94 = vmatprep.subr.mxu0 0.0
    %95 = vmatpush1.msra.mxu0 0.0
    %96 = vmatprep.subr.mxu0 0.0
    %97 = vmatpush1.msra.mxu0 0.0
    %98 = vmatprep.subr.mxu0 0.0
    %99 = vmatpush1.msra.mxu0 0.0
    %100 = vmatprep.subr.mxu0 0.0
    %101 = vmatpush1.msra.mxu0 0.0
    %102 = vmatprep.subr.mxu0 0.0
    %103 = vmatpush1.msra.mxu0 0.0
    %104 = vmatprep.subr.mxu0 0.0
    %105 = vmatpush1.msra.mxu0 0.0
    %106 = vmatprep.subr.mxu0 %v76
    %107 = vmatpush1.msra.mxu0 %v73
    %108 = vmatprep.subr.mxu0 %v52
    %109 = vmatpush1.msra.mxu0 %v51
    %110 = vmatprep.subr.mxu0 0.0
    %111 = vmatpush2.msra.mxu0 0.0
    %112 = vmatprep.subr.mxu0 0.0
    %113 = vmatpush2.msra.mxu0 0.0
    %114 = vmatprep.subr.mxu0 0.0
    %115 = vmatpush2.msra.mxu0 0.0
    %116 = vmatprep.subr.mxu0 0.0
    %117 = vmatpush2.msra.mxu0 0.0
    %118 = vmatprep.subr.mxu0 0.0
    %119 = vmatpush2.msra.mxu0 0.0
    %120 = vmatprep.subr.mxu0 0.0
    %121 = vmatpush2.msra.mxu0 0.0
    %122 = vmatprep.subr.mxu0 0.0
    %123 = vmatpush2.msra.mxu0 0.0
    %124 = vmatprep.subr.mxu0 0.0
    %125 = vmatpush2.msra.mxu0 0.0
    %126 = vmatprep.subr.mxu0 0.0
    %127 = vmatpush2.msra.mxu0 0.0
    %128 = vmatprep.subr.mxu0 0.0
    %129 = vmatpush2.msra.mxu0 0.0
    %130 = vmatprep.subr.mxu0 0.0
    %131 = vmatpush2.msra.mxu0 0.0
    %132 = vmatprep.subr.mxu0 0.0
    %133 = vmatpush2.msra.mxu0 0.0
    %134 = vmatprep.subr.mxu0 0.0
    %135 = vmatpush2.msra.mxu0 0.0
    %136 = vmatprep.subr.mxu0 0.0
    %137 = vmatpush2.msra.mxu0 0.0
    %138 = vmatprep.subr.mxu0 0.0
    %139 = vmatpush2.msra.mxu0 0.0
    %140 = vmatprep.subr.mxu0 0.0
    %141 = vmatpush2.msra.mxu0 0.0
    %142 = vmatprep.mubr.f32.mxu0 0.0
    %143 = vmatmul.mubr.f32.gmra.mxu0 %v69
    %v144 = vpop.f32.mrf.mxu0
    %v145 = vadd.f32 %v60, %v144
    %v146 = vpop.f32.mrf.mxu0
    %v147 = vadd.f32 %v64, %v146
    %148 = vdwg.mxu0
    %v149 = vmax.f32 %v145, 0.0
    %v150 = vmax.f32 %v147, 0.0
    %v151 = vpack.c.bf16 %v149, %v149
    %v152 = vpack.c.bf16 %v150, %v150
    %v153 = vld [vmem:[#allocation3] sm:$0xf]
    %v154 = vld [vmem:[#allocation3 + $0x4] sm:$0xf]
    %v155 = vld [vmem:[#allocation3 + $0x8] sm:$0xf]
    %v156 = vld [vmem:[#allocation3 + $0xc] sm:$0xf]
    %v157 = vld [vmem:[#allocation3 + $0x10] sm:$0xf]
    %v158 = vld [vmem:[#allocation3 + $0x14] sm:$0xf]
    %v159 = vld [vmem:[#allocation3 + $0x18] sm:$0xf]
    %v160 = vld [vmem:[#allocation3 + $0x1c] sm:$0xf]
    %v161 = vld [vmem:[#allocation3 + $0x20] sm:$0xf]
    %v162 = vld [vmem:[#allocation3 + $0x24] sm:$0xf]
    %v163 = vld [vmem:[#allocation3 + $0x28] sm:$0xf]
    %v164 = vld [vmem:[#allocation3 + $0x2c] sm:$0xf]
    %v165 = vld [vmem:[#allocation3 + $0x30] sm:$0xf]
    %v166 = vld [vmem:[#allocation3 + $0x34] sm:$0xf]
    %v167 = vld [vmem:[#allocation3 + $0x38] sm:$0xf]
    %v168 = vld [vmem:[#allocation3 + $0x3c] sm:$0xf]
    %v169 = vld [vmem:[#allocation3 + $0x40] sm:$0xf]
    %v170 = vld [vmem:[#allocation3 + $0x44] sm:$0xf]
    %v171 = vld [vmem:[#allocation3 + $0x48] sm:$0xf]
    %v172 = vld [vmem:[#allocation3 + $0x4c] sm:$0xf]
    %v173 = vld [vmem:[#allocation3 + $0x50] sm:$0xf]
    %v174 = vld [vmem:[#allocation3 + $0x54] sm:$0xf]
    %v175 = vld [vmem:[#allocation3 + $0x58] sm:$0xf]
    %v176 = vld [vmem:[#allocation3 + $0x5c] sm:$0xf]
    %v177 = vld [vmem:[#allocation3 + $0x60] sm:$0xf]
    %v178 = vld [vmem:[#allocation3 + $0x64] sm:$0xf]
    %v179 = vld [vmem:[#allocation3 + $0x68] sm:$0xf]
    %v180 = vld [vmem:[#allocation3 + $0x6c] sm:$0xf]
    %v181 = vld [vmem:[#allocation3 + $0x70] sm:$0xf]
    %v182 = vld [vmem:[#allocation3 + $0x74] sm:$0xf]
    %v183 = vld [vmem:[#allocation3 + $0x78] sm:$0xf]
    %v184 = vld [vmem:[#allocation3 + $0x7c] sm:$0xf]
    %v185 = vld [vmem:[%s4] sm:$0x1]
    %v187 = vlaneseq
    %v188 = vshrl.u32 %v187, 7
    %v189 = vsub.s32 0, %v188
    %v190 = vrot.slane %v185, %v189
    %v224 = vunpack.c.l.b16 %v153
    %v225 = vunpack.c.l.b16 %v154
    %v226 = vunpack.c.l.b16 %v155
    %v227 = vunpack.c.l.b16 %v156
    %v228 = vunpack.c.l.b16 %v157
    %v229 = vunpack.c.l.b16 %v158
    %v230 = vunpack.c.l.b16 %v159
    %v231 = vunpack.c.l.b16 %v160
    %v232 = vunpack.c.l.b16 %v161
    %v233 = vunpack.c.l.b16 %v162
    %v234 = vunpack.c.l.b16 %v163
    %v235 = vunpack.c.l.b16 %v164
    %v236 = vunpack.c.l.b16 %v165
    %v237 = vunpack.c.l.b16 %v166
    %v238 = vunpack.c.l.b16 %v167
    %v239 = vunpack.c.l.b16 %v168
    %v240 = vunpack.c.l.b16 %v169
    %v241 = vunpack.c.l.b16 %v170
    %v242 = vunpack.c.l.b16 %v171
    %v243 = vunpack.c.l.b16 %v172
    %v244 = vunpack.c.l.b16 %v173
    %v245 = vunpack.c.l.b16 %v174
    %v246 = vunpack.c.l.b16 %v175
    %v247 = vunpack.c.l.b16 %v176
    %v248 = vunpack.c.l.b16 %v177
    %v249 = vunpack.c.l.b16 %v178
    %v250 = vunpack.c.l.b16 %v179
    %v251 = vunpack.c.l.b16 %v180
    %v252 = vunpack.c.l.b16 %v181
    %v253 = vunpack.c.l.b16 %v182
    %v254 = vunpack.c.l.b16 %v183
    %v255 = vunpack.c.l.b16 %v184
    %v256 = vpack.c.b16 %v225, %v224
    %v257 = vpack.c.b16 %v227, %v226
    %v258 = vpack.c.b16 %v229, %v228
    %v259 = vpack.c.b16 %v231, %v230
    %v260 = vpack.c.b16 %v233, %v232
    %v261 = vpack.c.b16 %v235, %v234
    %v262 = vpack.c.b16 %v237, %v236
    %v263 = vpack.c.b16 %v239, %v238
    %v264 = vpack.c.b16 %v241, %v240
    %v265 = vpack.c.b16 %v243, %v242
    %v266 = vpack.c.b16 %v245, %v244
    %v267 = vpack.c.b16 %v247, %v246
    %v268 = vpack.c.b16 %v249, %v248
    %v269 = vpack.c.b16 %v251, %v250
    %v270 = vpack.c.b16 %v253, %v252
    %v271 = vpack.c.b16 %v255, %v254
    %288 = vmatprep.subr.bf16.mxu0 0
    %289 = vmatpush1.bf16.msra.mxu0 %v263
    %290 = vmatprep.subr.bf16.mxu0 0
    %291 = vmatpush1.bf16.msra.mxu0 %v262
    %292 = vmatprep.subr.bf16.mxu0 0
    %293 = vmatpush1.bf16.msra.mxu0 %v261
    %294 = vmatprep.subr.bf16.mxu0 0
    %295 = vmatpush1.bf16.msra.mxu0 %v260
    %296 = vmatprep.subr.bf16.mxu0 0
    %297 = vmatpush1.bf16.msra.mxu0 %v259
    %298 = vmatprep.subr.bf16.mxu0 0
    %299 = vmatpush1.bf16.msra.mxu0 %v258
    %300 = vmatprep.subr.bf16.mxu0 0
    %301 = vmatpush1.bf16.msra.mxu0 %v257
    %302 = vmatprep.subr.bf16.mxu0 0
    %303 = vmatpush1.bf16.msra.mxu0 %v256
    %304 = vmatprep.subr.bf16.mxu0 0
    %305 = vmatpush2.bf16.msra.mxu0 %v271
    %306 = vmatprep.subr.bf16.mxu0 0
    %307 = vmatpush2.bf16.msra.mxu0 %v270
    %308 = vmatprep.subr.bf16.mxu0 0
    %309 = vmatpush2.bf16.msra.mxu0 %v269
    %310 = vmatprep.subr.bf16.mxu0 0
    %311 = vmatpush2.bf16.msra.mxu0 %v268
    %312 = vmatprep.subr.bf16.mxu0 0
    %313 = vmatpush2.bf16.msra.mxu0 %v267
    %314 = vmatprep.subr.bf16.mxu0 0
    %315 = vmatpush2.bf16.msra.mxu0 %v266
    %316 = vmatprep.subr.bf16.mxu0 0
    %317 = vmatpush2.bf16.msra.mxu0 %v265
    %318 = vmatprep.subr.bf16.mxu0 0
    %319 = vmatpush2.bf16.msra.mxu0 %v264
    %320 = vmatprep.mubr.bf16.mxu0 %v152
    %321 = vmatmul.mubr.bf16.gmra.mxu0 %v151
    %v322 = vpop.f32.mrf.mxu0
    %v323 = vadd.f32 %v190, %v322
    %v324 = vpop.f32.mrf.mxu0
    %v325 = vpop.f32.mrf.mxu0
    %v326 = vpop.f32.mrf.mxu0
    %327 = vdwg.mxu0
    %v328 = vmax.f32 %v323, 0.0
    %v329 = vpack.c.bf16 %v328, %v328
    %v330 = vld [vmem:[%s5] sm:$0xf]
    %v331 = vld [vmem:[%s5 + $0x4] sm:$0xf]
    %v332 = vld [vmem:[%s5 + $0x8] sm:$0xf]
    %v333 = vld [vmem:[%s5 + $0xc] sm:$0xf]
    %v334 = vld [vmem:[%s5 + $0x10] sm:$0xf]
    %v335 = vld [vmem:[%s5 + $0x14] sm:$0xf]
    %v336 = vld [vmem:[%s5 + $0x18] sm:$0xf]
    %v337 = vld [vmem:[%s5 + $0x1c] sm:$0xf]
    %v338 = vld [vmem:[%s5 + $0x20] sm:$0xf]
    %v339 = vld [vmem:[%s5 + $0x24] sm:$0xf]
    %v340 = vld [vmem:[%s5 + $0x28] sm:$0xf]
    %v341 = vld [vmem:[%s5 + $0x2c] sm:$0xf]
    %v342 = vld [vmem:[%s5 + $0x30] sm:$0xf]
    %v343 = vld [vmem:[%s5 + $0x34] sm:$0xf]
    %v344 = vld [vmem:[%s5 + $0x38] sm:$0xf]
    %v345 = vld [vmem:[%s5 + $0x3c] sm:$0xf]
    %v346 = vld [vmem:[%s6] sm:$0x1]
    %v348 = vlaneseq
    %v349 = vshrl.u32 %v348, 7
    %v350 = vsub.s32 0, %v349
    %v351 = vrot.slane %v346, %v350
    %v369 = vunpack.c.l.b16 %v330
    %v370 = vunpack.c.l.b16 %v331
    %v371 = vunpack.c.l.b16 %v332
    %v372 = vunpack.c.l.b16 %v333
    %v373 = vunpack.c.l.b16 %v334
    %v374 = vunpack.c.l.b16 %v335
    %v375 = vunpack.c.l.b16 %v336
    %v376 = vunpack.c.l.b16 %v337
    %v377 = vunpack.c.l.b16 %v338
    %v378 = vunpack.c.l.b16 %v339
    %v379 = vunpack.c.l.b16 %v340
    %v380 = vunpack.c.l.b16 %v341
    %v381 = vunpack.c.l.b16 %v342
    %v382 = vunpack.c.l.b16 %v343
    %v383 = vunpack.c.l.b16 %v344
    %v384 = vunpack.c.l.b16 %v345
    %v385 = vpack.c.b16 %v370, %v369
    %v386 = vpack.c.b16 %v372, %v371
    %v387 = vpack.c.b16 %v374, %v373
    %v388 = vpack.c.b16 %v376, %v375
    %v389 = vpack.c.b16 %v378, %v377
    %v390 = vpack.c.b16 %v380, %v379
    %v391 = vpack.c.b16 %v382, %v381
    %v392 = vpack.c.b16 %v384, %v383
    %401 = vmatprep.subr.bf16.mxu0 0
    %402 = vmatpush1.bf16.msra.mxu0 %v392
    %403 = vmatprep.subr.bf16.mxu0 0
    %404 = vmatpush1.bf16.msra.mxu0 %v391
    %405 = vmatprep.subr.bf16.mxu0 0
    %406 = vmatpush1.bf16.msra.mxu0 %v390
    %407 = vmatprep.subr.bf16.mxu0 0
    %408 = vmatpush1.bf16.msra.mxu0 %v389
    %409 = vmatprep.subr.bf16.mxu0 0
    %410 = vmatpush1.bf16.msra.mxu0 %v388
    %411 = vmatprep.subr.bf16.mxu0 0
    %412 = vmatpush1.bf16.msra.mxu0 %v387
    %413 = vmatprep.subr.bf16.mxu0 0
    %414 = vmatpush1.bf16.msra.mxu0 %v386
    %415 = vmatprep.subr.bf16.mxu0 0
    %416 = vmatpush1.bf16.msra.mxu0 %v385
    %417 = vmatprep.subr.bf16.mxu0 0
    %418 = vmatpush2.bf16.msra.mxu0 0
    %419 = vmatprep.subr.bf16.mxu0 0
    %420 = vmatpush2.bf16.msra.mxu0 0
    %421 = vmatprep.subr.bf16.mxu0 0
    %422 = vmatpush2.bf16.msra.mxu0 0
    %423 = vmatprep.subr.bf16.mxu0 0
    %424 = vmatpush2.bf16.msra.mxu0 0
    %425 = vmatprep.subr.bf16.mxu0 0
    %426 = vmatpush2.bf16.msra.mxu0 0
    %427 = vmatprep.subr.bf16.mxu0 0
    %428 = vmatpush2.bf16.msra.mxu0 0
    %429 = vmatprep.subr.bf16.mxu0 0
    %430 = vmatpush2.bf16.msra.mxu0 0
    %431 = vmatprep.subr.bf16.mxu0 0
    %432 = vmatpush2.bf16.msra.mxu0 0
    %433 = vmatprep.mubr.bf16.mxu0 0
    %434 = vmatmul.mubr.bf16.gmra.mxu0 %v329
    %v435 = vpop.f32.mrf.mxu0
    %v436 = vadd.f32 %v351, %v435
    %v437 = vpop.f32.mrf.mxu0
    %v438 = vpop.f32.mrf.mxu0
    %v439 = vpop.f32.mrf.mxu0
    %440 = vdwg.mxu0
    %v441 = vmax.f32 %v436, 0.0
    %v442 = vld [vmem:[%s7] sm:$0x1]
    %v443 = vpack.c.bf16 %v441, %v441
    %v444 = vld [vmem:[#allocation2] sm:$0x1]
    %446 = vset.pattern.permute.xlu0 0
    %447 = vperm.xlu0 %446, %v444
    %v448 = vpop.permute.xlu0 %447
    %v450 = vlaneseq
    %v451 = vshrl.u32 %v450, 7
    %v452 = vsub.s32 0, %v451
    %v453 = vrot.slane %v448, %v452
    %vm454 = vcmask 523264
    %v456 = vsel %vm454, %v442, 0
    %v459 = vsel %vm454, %v443, 0
    %461 = vmatprep.subr.bf16.mxu0 0
    %462 = vmatpush1.bf16.xpose.msra.mxu0 0
    %463 = vmatprep.subr.bf16.mxu0 0
    %464 = vmatpush1.bf16.xpose.msra.mxu0 0
    %465 = vmatprep.subr.bf16.mxu0 0
    %466 = vmatpush1.bf16.xpose.msra.mxu0 0
    %467 = vmatprep.subr.bf16.mxu0 0
    %468 = vmatpush1.bf16.xpose.msra.mxu0 0
    %469 = vmatprep.subr.bf16.mxu0 0
    %470 = vmatpush1.bf16.xpose.msra.mxu0 0
    %471 = vmatprep.subr.bf16.mxu0 0
    %472 = vmatpush1.bf16.xpose.msra.mxu0 0
    %473 = vmatprep.subr.bf16.mxu0 0
    %474 = vmatpush1.bf16.xpose.msra.mxu0 0
    %475 = vmatprep.subr.bf16.mxu0 0
    %476 = vmatpush1.bf16.xpose.msra.mxu0 %v459
    %477 = vmatprep.subr.bf16.mxu0 0
    %478 = vmatpush2.bf16.xpose.msra.mxu0 0
    %479 = vmatprep.subr.bf16.mxu0 0
    %480 = vmatpush2.bf16.xpose.msra.mxu0 0
    %481 = vmatprep.subr.bf16.mxu0 0
    %482 = vmatpush2.bf16.xpose.msra.mxu0 0
    %483 = vmatprep.subr.bf16.mxu0 0
    %484 = vmatpush2.bf16.xpose.msra.mxu0 0
    %485 = vmatprep.subr.bf16.mxu0 0
    %486 = vmatpush2.bf16.xpose.msra.mxu0 0
    %487 = vmatprep.subr.bf16.mxu0 0
    %488 = vmatpush2.bf16.xpose.msra.mxu0 0
    %489 = vmatprep.subr.bf16.mxu0 0
    %490 = vmatpush2.bf16.xpose.msra.mxu0 0
    %491 = vmatprep.subr.bf16.mxu0 0
    %492 = vmatpush2.bf16.xpose.msra.mxu0 0
    %493 = vmatprep.mubr.bf16.mxu0 0
    %494 = vmatmul.mubr.bf16.gmra.mxu0 %v456
    %v495 = vpop.f32.mrf.mxu0
    %v496 = vadd.f32 %v453, %v495
    %v497 = vpop.f32.mrf.mxu0
    %v498 = vpop.f32.mrf.mxu0
    %v499 = vpop.f32.mrf.mxu0
    %500 = vdwg.mxu0
    %vm501 = vcmask 57344
    %502 = vst.msk [vmem:[#allocation6] sm:$0x1] %vm501, %v496
    // Predicated region
    $region42: #{mlp_forward.1} parent=1 // pred_check
      _
    $region43: #{mlp_forward.1} parent=1 // pred_check_branch
      %504 = sbr.rel (0) target = $region45
    $region44: #{mlp_forward.1} parent=1 // pred_region
      %s506 = ssub.s32 16, 16
      %507 = vsyncadd [#allocation5], %s506
      %s509 = sshll.u32 [#allocation6], 4
      %s510 = int_to_ptr.vmem [resolvable:$true] %s509
      %512 = dma.vmem_to_hbm [thread:$0]  %s510, 16, %s9, [#allocation5]
    $region45: #{mlp_forward.1} parent=1 // pred_fallthru
      _
    // Predicated region
    $region46: #{mlp_forward.1} parent=1 // pred_check
      _
    $region47: #{mlp_forward.1} parent=1 // pred_check_branch
      %514 = sbr.rel (0) target = $region49
    $region48: #{mlp_forward.1} parent=1 // pred_region
      %515 = dma.done [#allocation5], 16
    $region49: #{mlp_forward.1} parent=1 // pred_fallthru
      _
    %516 = vsyncpa [#allocation4], 1
    %517 = vsyncpa [#allocation5], 1

</llo_original>
